<compile_context>
chip_gen: v7x
topology: tpu7x:2x2x1
jax: 0.10.0
libtpu: 0.0.40
codegen_flags: <defaults>
</compile_context>

<pallas_src>
import jax
import jax.numpy as jnp
from jax import lax
from jax.experimental import pallas as pl
from jax.experimental.pallas import tpu as pltpu


def _round_up(n, m):
    return ((n + m - 1) // m) * m


def _make_kernel(C_in, C_out, K, dilation, TILE_T, use_lc):
    two_C = 2 * C_out
    halo = dilation * (K - 1)

    def kernel(*refs):
        i = 0
        xc_ref = refs[i]; i += 1        # (C_in, TILE_T)     bf16, tile t
        xn_ref = refs[i]; i += 1        # (C_in, TILE_T)     bf16, tile t+1 (halo src)
        wfg_ref = refs[i]; i += 1       # (2*C_out, K*C_in)  bf16, fused taps
        bias_ref = refs[i]; i += 1      # (2*C_out, 1)       f32, bfg (+gc) (+blc)
        w1_ref = refs[i]; i += 1        # (C_out, C_out)     bf16
        b1_ref = refs[i]; i += 1        # (C_out, 1)         f32
        if use_lc:
            wlc_ref = refs[i]; i += 1   # (2*C_out, cond)    bf16
            lc_ref = refs[i]; i += 1    # (cond, TILE_T)     bf16
        res_ref = refs[i]; i += 1       # (C_in, TILE_T)     f32
        skip_ref = refs[i]; i += 1      # (C_out, TILE_T)    f32

        x_cur = xc_ref[...]
        if halo > 0:
            window = jnp.concatenate([x_cur, xn_ref[:, :halo]], axis=-1)
        else:
            window = x_cur                               # (C_in, TILE_T + halo)

        # im2col: stack the K dilated taps along the contraction (sublane) axis
        # so the dilated conv becomes ONE deep MXU matmul instead of K shallow ones.
        taps = [window[:, k * dilation:k * dilation + TILE_T] for k in range(K)]
        xk = taps[0] if K == 1 else jnp.concatenate(taps, axis=0)  # (K*C_in, TILE_T)

        fg = jnp.dot(wfg_ref[...], xk, preferred_element_type=jnp.float32)
        fg = fg + bias_ref[...]                          # fused bias / gc / lc-bias

        if use_lc:                                       # local condition (1x1 conv)
            fg = fg + jnp.dot(wlc_ref[...], lc_ref[...],
                              preferred_element_type=jnp.float32)

        # Gated activation; bf16 transcendentals ride the bf16 EUP on v6e/v7x.
        f = jnp.tanh(fg[:C_out, :].astype(jnp.bfloat16))
        g = jax.nn.sigmoid(fg[C_out:, :].astype(jnp.bfloat16))
        gated = f * g                                    # (C_out, TILE_T) bf16

        skip = jnp.dot(w1_ref[...], gated,
                       preferred_element_type=jnp.float32) + b1_ref[...]
        skip_ref[...] = skip.astype(skip_ref.dtype)
        # residual = x[..., -T_out:] + skip -> inside this tile that is
        # window[:, halo : halo + TILE_T].
        res_ref[...] = (window[:, halo:halo + TILE_T].astype(jnp.float32)
                        + skip).astype(res_ref.dtype)

    return kernel


def residual_layer_forward(x, params, gc=None, lc=None, *,
                           kernel_size, dilation, tile_t=512):
    B, C_in, T = x.shape
    wfg = params["conv_fg_w"]            # (2*C_out, C_in, K)   PyTorch OIH
    bfg = params["conv_fg_b"]            # (2*C_out,)
    w1 = params["conv_1x1_w"]            # (C_out, C_out, 1)
    b1 = params["conv_1x1_b"]            # (C_out,)
    two_C = wfg.shape[0]
    C_out = two_C // 2
    K = kernel_size
    halo = dilation * (K - 1)
    T_out = T - halo
    use_gc = gc is not None
    use_lc = lc is not None
    assert C_in == C_out, "residual add requires in_channels == out_channels"
    assert T_out >= 1

    # ---- time tiling: TILE_T multiple of 128 (lane-dense loads/stores) ------
    TILE_T = min(tile_t, _round_up(T_out, 128))
    TILE_T = max(TILE_T, _round_up(halo, 128))   # the halo must fit in one next-tile
    TILE_T = _round_up(TILE_T, 128)
    n_t = pl.cdiv(T_out, TILE_T)
    T_out_pad = n_t * TILE_T
    assert halo <= TILE_T

    cdt = jnp.bfloat16   # MXU compute dtype; accumulation stays f32 in-kernel

    # Pad x so every (tile t, tile t+1) pair is in bounds; padded columns are
    # zeros and the corresponding output columns are sliced away at the end.
    T_pad = (n_t + 1) * TILE_T
    x_p = jnp.pad(x, ((0, 0), (0, 0), (0, T_pad - T))).astype(cdt)

    # Fused conv weights: (2*C_out, K*C_in), tap-major along the contraction.
    w_fused = jnp.transpose(wfg, (0, 2, 1)).reshape(two_C, K * C_in).astype(cdt)

    # Fold conv bias, global-condition Linear and lc bias into ONE per-batch
    # (2*C_out, 1) vector -> no degenerate N=1 gc matmul inside the kernel.
    bias = jnp.broadcast_to(bfg.reshape(1, two_C), (B, two_C))
    if use_gc:
        bias = bias + gc @ params["gc_w"].T + params["gc_b"][None, :]
    if use_lc:
        bias = bias + params["lc_b"][None, :]
    bias = bias.reshape(B, two_C, 1).astype(jnp.float32)

    inputs = [
        x_p,                                        # tile t
        x_p,                                        # tile t+1 (right halo)
        w_fused,
        bias,
        w1.reshape(C_out, C_out).astype(cdt),
        b1.reshape(C_out, 1).astype(jnp.float32),
    ]
    in_specs = [
        pl.BlockSpec((pl.Squeezed(), C_in, TILE_T), lambda b, t: (b, 0, t)),
        pl.BlockSpec((pl.Squeezed(), C_in, TILE_T), lambda b, t: (b, 0, t + 1)),
        pl.BlockSpec((two_C, K * C_in), lambda b, t: (0, 0)),
        pl.BlockSpec((pl.Squeezed(), two_C, 1), lambda b, t: (b, 0, 0)),
        pl.BlockSpec((C_out, C_out), lambda b, t: (0, 0)),
        pl.BlockSpec((C_out, 1), lambda b, t: (0, 0)),
    ]

    if use_lc:
        wlc = params["lc_w"]                        # (2*C_out, cond, 1)
        cond_l = wlc.shape[1]
        T_lc = lc.shape[-1]
        # The 1x1 conv commutes with time slicing, so slice lc to the last
        # T_out steps here and pad it to the tiled length.
        lc_s = lc[:, :, T_lc - T_out:]
        lc_p = jnp.pad(lc_s, ((0, 0), (0, 0), (0, T_out_pad - T_out))).astype(cdt)
        inputs += [wlc.reshape(two_C, cond_l).astype(cdt), lc_p]
        in_specs += [
            pl.BlockSpec((two_C, cond_l), lambda b, t: (0, 0)),
            pl.BlockSpec((pl.Squeezed(), cond_l, TILE_T), lambda b, t: (b, 0, t)),
        ]

    out_shape = (
        jax.ShapeDtypeStruct((B, C_in, T_out_pad), jnp.float32),   # residual
        jax.ShapeDtypeStruct((B, C_out, T_out_pad), jnp.float32),  # skip
    )
    out_specs = (
        pl.BlockSpec((pl.Squeezed(), C_in, TILE_T), lambda b, t: (b, 0, t)),
        pl.BlockSpec((pl.Squeezed(), C_out, TILE_T), lambda b, t: (b, 0, t)),
    )

    kernel = _make_kernel(C_in, C_out, K, dilation, TILE_T, use_lc)
    res_p, skip_p = pl.pallas_call(
        kernel,
        out_shape=out_shape,
        grid_spec=pltpu.PrefetchScalarGridSpec(
            num_scalar_prefetch=0,
            grid=(B, n_t),
            in_specs=in_specs,
            out_specs=out_specs,
        ),
        compiler_params=pltpu.CompilerParams(
            dimension_semantics=("parallel", "parallel"),
            vmem_limit_bytes=48 * 1024 * 1024,   # explicit budget (fits v7x's 64 MiB)
        ),
    )(*inputs)
    return res_p[:, :, :T_out], skip_p[:, :, :T_out]


def reference_forward(x, params, gc=None, lc=None, *, kernel_size, dilation):
    """Pure-JAX f32 reference (mirrors the PyTorch module)."""
    wfg = params["conv_fg_w"]
    bfg = params["conv_fg_b"]
    fg = lax.conv_general_dilated(
        x, wfg, window_strides=(1,), padding="VALID",
        rhs_dilation=(dilation,), dimension_numbers=("NCH", "OIH", "NCH"))
    fg = fg + bfg[None, :, None]
    T_out = fg.shape[-1]
    if lc is not None:
        wlc = params["lc_w"][:, :, 0]
        blc = params["lc_b"]
        lc_fg = jnp.einsum("oc,bct->bot", wlc, lc) + blc[None, :, None]
        fg = fg + lc_fg[:, :, -T_out:]
    if gc is not None:
        wgc = params["gc_w"]
        bgc = params["gc_b"]
        gc_fg = gc @ wgc.T + bgc
        fg = fg + gc_fg[:, :, None]
    C_out = fg.shape[1] // 2
    f = jnp.tanh(fg[:, :C_out])
    g = jax.nn.sigmoid(fg[:, C_out:])
    gated = f * g
    w1 = params["conv_1x1_w"][:, :, 0]
    b1 = params["conv_1x1_b"]
    skip = jnp.einsum("oc,bct->bot", w1, gated) + b1[None, :, None]
    residual = x[:, :, -T_out:] + skip
    return residual, skip


if __name__ == "__main__":
    def make_params(key, C, K, COND):
        keys = jax.random.split(key, 8)
        return {
            "conv_fg_w": 0.1 * jax.random.normal(keys[0], (2 * C, C, K), jnp.float32),
            "conv_fg_b": 0.1 * jax.random.normal(keys[1], (2 * C,), jnp.float32),
            "conv_1x1_w": 0.1 * jax.random.normal(keys[2], (C, C, 1), jnp.float32),
            "conv_1x1_b": 0.1 * jax.random.normal(keys[3], (C,), jnp.float32),
            "gc_w": 0.1 * jax.random.normal(keys[4], (2 * C, COND), jnp.float32),
            "gc_b": 0.1 * jax.random.normal(keys[5], (2 * C,), jnp.float32),
            "lc_w": 0.1 * jax.random.normal(keys[6], (2 * C, COND, 1), jnp.float32),
            "lc_b": 0.1 * jax.random.normal(keys[7], (2 * C,), jnp.float32),
        }

    kp1, kx1, kgc, klc, kp2, kx2 = jax.random.split(jax.random.PRNGKey(0), 6)

    # bf16 inputs / f32 accumulation -> relaxed tolerance vs. the f32 reference.
    ATOL = RTOL = 2e-2

    # --- test 1: small shapes, gc + lc conditioning, single time tile --------
    B, C, T, K, D, COND = 2, 8, 16, 2, 2, 4
    params = make_params(kp1, C, K, COND)
    x = jax.random.normal(kx1, (B, C, T), jnp.float32)
    gc = jax.random.normal(kgc, (B, COND), jnp.float32)
    lc = jax.random.normal(klc, (B, COND, T), jnp.float32)

    res, skip = residual_layer_forward(x, params, gc=gc, lc=lc,
                                       kernel_size=K, dilation=D)
    jax.block_until_ready((res, skip))
    res_r, skip_r = reference_forward(x, params, gc=gc, lc=lc,
                                      kernel_size=K, dilation=D)
    assert res.shape == res_r.shape and skip.shape == skip_r.shape
    assert jnp.allclose(res, res_r, atol=ATOL, rtol=RTOL)
    assert jnp.allclose(skip, skip_r, atol=ATOL, rtol=RTOL)

    # --- test 2: multi time-tile path (grid=(1, 3)), no conditioning ---------
    B2, C2, T2, K2, D2 = 1, 16, 300, 2, 4
    params2 = make_params(kp2, C2, K2, COND)
    x2 = jax.random.normal(kx2, (B2, C2, T2), jnp.float32)

    res2, skip2 = residual_layer_forward(x2, params2, gc=None, lc=None,
                                         kernel_size=K2, dilation=D2, tile_t=128)
    jax.block_until_ready((res2, skip2))
    res2_r, skip2_r = reference_forward(x2, params2, gc=None, lc=None,
                                        kernel_size=K2, dilation=D2)
    assert res2.shape == res2_r.shape and skip2.shape == skip2_r.shape
    assert jnp.allclose(res2, res2_r, atol=ATOL, rtol=RTOL)
    assert jnp.allclose(skip2, skip2_r, atol=ATOL, rtol=RTOL)

    print("KERNEL_OK")
</pallas_src>

<mosaic_0001>
module attributes {stable_mosaic.version = 11 : i64} {
  func.func @kernel(%arg0: i32, %arg1: i32, %arg2: memref<1x8x128xbf16, #tpu.memory_space<vmem>>, %arg3: memref<1x8x128xbf16, #tpu.memory_space<vmem>>, %arg4: memref<16x16xbf16, #tpu.memory_space<vmem>>, %arg5: memref<1x16x1xf32, #tpu.memory_space<vmem>>, %arg6: memref<8x8xbf16, #tpu.memory_space<vmem>>, %arg7: memref<8x1xf32, #tpu.memory_space<vmem>>, %arg8: memref<16x4xbf16, #tpu.memory_space<vmem>>, %arg9: memref<1x4x128xbf16, #tpu.memory_space<vmem>>, %arg10: memref<1x8x128xf32, #tpu.memory_space<vmem>>, %arg11: memref<1x8x128xf32, #tpu.memory_space<vmem>>) attributes {dimension_semantics = [#tpu.dimension_semantics<parallel>, #tpu.dimension_semantics<parallel>], iteration_bounds = array<i64: 2, 1>, scalar_prefetch = 0 : i64, scratch_operands = 0 : i64, tpu.core_type = #tpu.core_type<tc>, window_params = [{transform_indices = @transform_0, window_bounds = array<i64: 1, 8, 128>}, {transform_indices = @transform_1, window_bounds = array<i64: 1, 8, 128>}, {pipeline_mode = #tpu.pipeline_mode<synchronous>, transform_indices = @transform_2, window_bounds = array<i64: 16, 16>}, {transform_indices = @transform_3, window_bounds = array<i64: 1, 16, 1>}, {pipeline_mode = #tpu.pipeline_mode<synchronous>, transform_indices = @transform_4, window_bounds = array<i64: 8, 8>}, {pipeline_mode = #tpu.pipeline_mode<synchronous>, transform_indices = @transform_5, window_bounds = array<i64: 8, 1>}, {pipeline_mode = #tpu.pipeline_mode<synchronous>, transform_indices = @transform_6, window_bounds = array<i64: 16, 4>}, {transform_indices = @transform_7, window_bounds = array<i64: 1, 4, 128>}, {transform_indices = @transform_8, window_bounds = array<i64: 1, 8, 128>}, {transform_indices = @transform_9, window_bounds = array<i64: 1, 8, 128>}]} {
    %c0 = arith.constant 0 : index
    %c0_0 = arith.constant 0 : index
    %c0_1 = arith.constant 0 : index
    %0 = vector.load %arg2[%c0, %c0_0, %c0_1] : memref<1x8x128xbf16, #tpu.memory_space<vmem>>, vector<1x8x128xbf16>
    %1 = vector.shape_cast %0 : vector<1x8x128xbf16> to vector<8x128xbf16>
    %c0_2 = arith.constant 0 : index
    %c0_3 = arith.constant 0 : index
    %c0_4 = arith.constant 0 : index
    %2 = vector.load %arg3[%c0_2, %c0_3, %c0_4] : memref<1x8x128xbf16, #tpu.memory_space<vmem>>, vector<1x8x2xbf16>
    %3 = vector.shape_cast %2 : vector<1x8x2xbf16> to vector<8x2xbf16>
    %4 = tpu.concatenate %1, %3 in 1 : vector<8x128xbf16>, vector<8x2xbf16> -> vector<8x130xbf16>
    %5 = vector.extract_strided_slice %4 {offsets = [0, 0], sizes = [8, 128], strides = [1, 1]} : vector<8x130xbf16> to vector<8x128xbf16>
    %6 = vector.extract_strided_slice %4 {offsets = [0, 2], sizes = [8, 128], strides = [1, 1]} : vector<8x130xbf16> to vector<8x128xbf16>
    %7 = tpu.concatenate %5, %6 in 0 : vector<8x128xbf16>, vector<8x128xbf16> -> vector<16x128xbf16>
    %c0_5 = arith.constant 0 : index
    %c0_6 = arith.constant 0 : index
    %8 = vector.load %arg4[%c0_5, %c0_6] : memref<16x16xbf16, #tpu.memory_space<vmem>>, vector<16x16xbf16>
    %cst = arith.constant dense<0.000000e+00> : vector<16x128xf32>
    %9 = tpu.matmul %8, %7, %cst {dimension_numbers = #tpu.dot_dimension_numbers<[1], [0], [0], [1], [0, 0, 1, 1], [], []>} : vector<16x16xbf16>, vector<16x128xbf16>, vector<16x128xf32> -> vector<16x128xf32>
    %c0_7 = arith.constant 0 : index
    %c0_8 = arith.constant 0 : index
    %c0_9 = arith.constant 0 : index
    %10 = vector.load %arg5[%c0_7, %c0_8, %c0_9] : memref<1x16x1xf32, #tpu.memory_space<vmem>>, vector<1x16x1xf32>
    %11 = vector.shape_cast %10 : vector<1x16x1xf32> to vector<16x1xf32>
    %12 = vector.broadcast %11 : vector<16x1xf32> to vector<16x128xf32>
    %13 = arith.addf %9, %12 : vector<16x128xf32>
    %c0_10 = arith.constant 0 : index
    %c0_11 = arith.constant 0 : index
    %14 = vector.load %arg8[%c0_10, %c0_11] : memref<16x4xbf16, #tpu.memory_space<vmem>>, vector<16x4xbf16>
    %c0_12 = arith.constant 0 : index
    %c0_13 = arith.constant 0 : index
    %c0_14 = arith.constant 0 : index
    %15 = vector.load %arg9[%c0_12, %c0_13, %c0_14] : memref<1x4x128xbf16, #tpu.memory_space<vmem>>, vector<1x4x128xbf16>
    %16 = vector.shape_cast %15 : vector<1x4x128xbf16> to vector<4x128xbf16>
    %cst_15 = arith.constant dense<0.000000e+00> : vector<16x128xf32>
    %17 = tpu.matmul %14, %16, %cst_15 {dimension_numbers = #tpu.dot_dimension_numbers<[1], [0], [0], [1], [0, 0, 1, 1], [], []>} : vector<16x4xbf16>, vector<4x128xbf16>, vector<16x128xf32> -> vector<16x128xf32>
    %18 = arith.addf %13, %17 : vector<16x128xf32>
    %19 = vector.extract_strided_slice %18 {offsets = [0, 0], sizes = [8, 128], strides = [1, 1]} : vector<16x128xf32> to vector<8x128xf32>
    %20 = arith.truncf %19 : vector<8x128xf32> to vector<8x128xbf16>
    %21 = math.tanh %20 : vector<8x128xbf16>
    %22 = vector.extract_strided_slice %18 {offsets = [8, 0], sizes = [8, 128], strides = [1, 1]} : vector<16x128xf32> to vector<8x128xf32>
    %23 = arith.truncf %22 : vector<8x128xf32> to vector<8x128xbf16>
    %24 = arith.negf %23 : vector<8x128xbf16>
    %25 = math.exp %24 : vector<8x128xbf16>
    %cst_16 = arith.constant 1.000000e+00 : bf16
    %26 = vector.broadcast %cst_16 : bf16 to vector<8x128xbf16>
    %27 = arith.addf %26, %25 : vector<8x128xbf16>
    %28 = arith.divf %26, %27 : vector<8x128xbf16>
    %29 = arith.mulf %21, %28 : vector<8x128xbf16>
    %c0_17 = arith.constant 0 : index
    %c0_18 = arith.constant 0 : index
    %30 = vector.load %arg6[%c0_17, %c0_18] : memref<8x8xbf16, #tpu.memory_space<vmem>>, vector<8x8xbf16>
    %cst_19 = arith.constant dense<0.000000e+00> : vector<8x128xf32>
    %31 = tpu.matmul %30, %29, %cst_19 {dimension_numbers = #tpu.dot_dimension_numbers<[1], [0], [0], [1], [0, 0, 1, 1], [], []>} : vector<8x8xbf16>, vector<8x128xbf16>, vector<8x128xf32> -> vector<8x128xf32>
    %c0_20 = arith.constant 0 : index
    %c0_21 = arith.constant 0 : index
    %32 = vector.load %arg7[%c0_20, %c0_21] : memref<8x1xf32, #tpu.memory_space<vmem>>, vector<8x1xf32>
    %33 = vector.broadcast %32 : vector<8x1xf32> to vector<8x128xf32>
    %34 = arith.addf %31, %33 : vector<8x128xf32>
    %c0_22 = arith.constant 0 : index
    %c0_23 = arith.constant 0 : index
    %c0_24 = arith.constant 0 : index
    %35 = vector.load %arg11[%c0_22, %c0_23, %c0_24] : memref<1x8x128xf32, #tpu.memory_space<vmem>>, vector<1x8x128xf32>
    %36 = vector.shape_cast %35 : vector<1x8x128xf32> to vector<8x128xf32>
    %37 = vector.shape_cast %34 : vector<8x128xf32> to vector<1x8x128xf32>
    tpu.vector_store %arg11[%c0_22, %c0_23, %c0_24], %37 {strides = array<i32>} : memref<1x8x128xf32, #tpu.memory_space<vmem>>, vector<1x8x128xf32>,
    %38 = vector.extract_strided_slice %4 {offsets = [0, 2], sizes = [8, 128], strides = [1, 1]} : vector<8x130xbf16> to vector<8x128xbf16>
    %39 = arith.extf %38 : vector<8x128xbf16> to vector<8x128xf32>
    %40 = arith.addf %39, %34 : vector<8x128xf32>
    %c0_25 = arith.constant 0 : index
    %c0_26 = arith.constant 0 : index
    %c0_27 = arith.constant 0 : index
    %41 = vector.load %arg10[%c0_25, %c0_26, %c0_27] : memref<1x8x128xf32, #tpu.memory_space<vmem>>, vector<1x8x128xf32>
    %42 = vector.shape_cast %41 : vector<1x8x128xf32> to vector<8x128xf32>
    %43 = vector.shape_cast %40 : vector<8x128xf32> to vector<1x8x128xf32>
    tpu.vector_store %arg10[%c0_25, %c0_26, %c0_27], %43 {strides = array<i32>} : memref<1x8x128xf32, #tpu.memory_space<vmem>>, vector<1x8x128xf32>,
    return
  }
  func.func @transform_0(%arg0: i32, %arg1: i32) -> (i32, i32, i32) {
    %c0_i32 = arith.constant 0 : i32
    %c0_i32_0 = arith.constant 0 : i32
    return %arg0, %c0_i32, %arg1 : i32, i32, i32
  }
  func.func @transform_1(%arg0: i32, %arg1: i32) -> (i32, i32, i32) {
    %c1_i32 = arith.constant 1 : i32
    %0 = arith.addi %arg1, %c1_i32 : i32
    %c0_i32 = arith.constant 0 : i32
    %c0_i32_0 = arith.constant 0 : i32
    return %arg0, %c0_i32, %0 : i32, i32, i32
  }
  func.func @transform_2(%arg0: i32, %arg1: i32) -> (i32, i32) {
    %c0_i32 = arith.constant 0 : i32
    %c0_i32_0 = arith.constant 0 : i32
    %c0_i32_1 = arith.constant 0 : i32
    return %c0_i32, %c0_i32_0 : i32, i32
  }
  func.func @transform_3(%arg0: i32, %arg1: i32) -> (i32, i32, i32) {
    %c0_i32 = arith.constant 0 : i32
    %c0_i32_0 = arith.constant 0 : i32
    %c0_i32_1 = arith.constant 0 : i32
    return %arg0, %c0_i32, %c0_i32_0 : i32, i32, i32
  }
  func.func @transform_4(%arg0: i32, %arg1: i32) -> (i32, i32) {
    %c0_i32 = arith.constant 0 : i32
    %c0_i32_0 = arith.constant 0 : i32
    %c0_i32_1 = arith.constant 0 : i32
    return %c0_i32, %c0_i32_0 : i32, i32
  }
  func.func @transform_5(%arg0: i32, %arg1: i32) -> (i32, i32) {
    %c0_i32 = arith.constant 0 : i32
    %c0_i32_0 = arith.constant 0 : i32
    %c0_i32_1 = arith.constant 0 : i32
    return %c0_i32, %c0_i32_0 : i32, i32
  }
  func.func @transform_6(%arg0: i32, %arg1: i32) -> (i32, i32) {
    %c0_i32 = arith.constant 0 : i32
    %c0_i32_0 = arith.constant 0 : i32
    %c0_i32_1 = arith.constant 0 : i32
    return %c0_i32, %c0_i32_0 : i32, i32
  }
  func.func @transform_7(%arg0: i32, %arg1: i32) -> (i32, i32, i32) {
    %c0_i32 = arith.constant 0 : i32
    %c0_i32_0 = arith.constant 0 : i32
    return %arg0, %c0_i32, %arg1 : i32, i32, i32
  }
  func.func @transform_8(%arg0: i32, %arg1: i32) -> (i32, i32, i32) {
    %c0_i32 = arith.constant 0 : i32
    %c0_i32_0 = arith.constant 0 : i32
    return %arg0, %c0_i32, %arg1 : i32, i32, i32
  }
  func.func @transform_9(%arg0: i32, %arg1: i32) -> (i32, i32, i32) {
    %c0_i32 = arith.constant 0 : i32
    %c0_i32_0 = arith.constant 0 : i32
    return %arg0, %c0_i32, %arg1 : i32, i32, i32
  }
}

</mosaic_0001>

<llo_original>
// kernel: tpu_custom_call.1
$region0: #{tpu_custom_call.1}
  #allocation0 [shape = 'u32[]', space=smem, size = 0x4, offset = 0x4, fixed_abs, tag = 'smem constant byte address 0x4 - core index']
  #allocation1 [shape = 'u32[144,128]{1,0:T(1,128)}', space=vmem, size = 0x12000, scoped, tag = 'internal scratch']
  %s0 = inlined_call_operand.vmem [shape: bf16[2,8,256], index: 0, kind: input, shape index: {}]
  %s1 = inlined_call_operand.vmem [shape: bf16[2,8,256], index: 1, kind: input, shape index: {}]
  %s2 = inlined_call_operand.vmem [shape: bf16[16,16], index: 2, kind: input, shape index: {}]
  %s3 = inlined_call_operand.vmem [shape: f32[2,16,1], index: 3, kind: input, shape index: {}]
  %s4 = inlined_call_operand.vmem [shape: bf16[8,8], index: 4, kind: input, shape index: {}]
  %s5 = inlined_call_operand.vmem [shape: f32[8,1], index: 5, kind: input, shape index: {}]
  %s6 = inlined_call_operand.vmem [shape: bf16[16,4], index: 6, kind: input, shape index: {}]
  %s7 = inlined_call_operand.vmem [shape: bf16[2,4,128], index: 7, kind: input, shape index: {}]
  %s8 = inlined_call_operand.hbm [shape: f32[2,8,128], index: 8, kind: output, shape index: {0}]
  %s9 = inlined_call_operand.hbm [shape: f32[2,8,128], index: 9, kind: output, shape index: {1}]
  %10 = xla_tuple %s8, %s9
  %s11 = sld [smem:[#allocation0]]
  $region73: #{tpu_custom_call.1} parent=0
    _
  %s13 = ssub.s32 1, %s11
  %s14 = scalar_select 0, %s13, %s11
  $region1: #{tpu_custom_call.1} parent=0
    #allocation2 [shape = 'u8[8192]{0}', space=vmem, size = 0x2000, scoped, tag = 'output window, operand 0']
    #allocation3 [shape = 's32[2]{0}', space=sflag, size = 0x8, scoped, tag = 'scoped memory for tpu_custom_call.1']
    #allocation4 [shape = 'u8[8192]{0}', space=vmem, size = 0x2000, scoped, tag = 'output window, operand 1']
    #allocation5 [shape = 's32[2]{0}', space=sflag, size = 0x8, scoped, tag = 'scoped memory for tpu_custom_call.1']
    %15 = vsyncpa [#allocation3], 0
    %s16 = scalar_lea.sflag [#allocation3], 1
    %17 = vsyncpa %s16, 0
    %18 = vsyncpa [#allocation5], 0
    %s19 = scalar_lea.sflag [#allocation5], 1
    %20 = vsyncpa %s19, 0
    loop: start=0, step=1, limit=4
    $region2: #{tpu_custom_call.1} parent=1 // loop_pre_header
      _
    $region3: #{tpu_custom_call.1} parent=1 // loop_header
      %s22 = sphi 0, %s26
      %p23 = scmp.ge.s32.totalorder %s22, 4
      %s29 = sphi 0, %s41
      %s30 = sphi 0, %s37
      %s31 = sphi 0, %s29
      %s32 = sphi 0, %s30
      %s33 = sphi 0, %s31
      %s34 = sphi 0, %s32
      %s46 = sphi 0, %s48
      %s49 = sphi 0, %s46
      %s50 = sphi 0, %s49
      %s66 = sphi 0, %s50
      %s76 = sphi 0, %s78
      %s79 = sphi 0, %s76
      %s80 = sphi 0, %s79
      %s96 = sphi 0, %s80
      %s100 = sphi 0, %s100
      %s102 = sphi 0, %s100
      %s103 = sphi 0, %s102
      %s117 = sphi 0, %s103
      %s123 = sphi 0, %s125
      %s126 = sphi 0, %s123
      %s127 = sphi 0, %s126
      %s143 = sphi 0, %s127
      %s147 = sphi 0, %s147
      %s149 = sphi 0, %s147
      %s150 = sphi 0, %s149
      %s164 = sphi 0, %s150
      %s168 = sphi 0, %s168
      %s170 = sphi 0, %s168
      %s171 = sphi 0, %s170
      %s185 = sphi 0, %s171
      %s189 = sphi 0, %s189
      %s191 = sphi 0, %s189
      %s192 = sphi 0, %s191
      %s206 = sphi 0, %s192
      %s214 = sphi 0, %s216
      %s217 = sphi 0, %s214
      %s218 = sphi 0, %s217
      %s234 = sphi 0, %s218
      %s242 = sphi 0, %s244
      %s245 = sphi 0, %s242
      %s246 = sphi 0, %s245
      %s262 = sphi 0, %s246
      %s270 = sphi 0, %s272
      %s273 = sphi 0, %s270
      %s274 = sphi 0, %s273
      %s290 = sphi 0, %s274
    $region4: #{tpu_custom_call.1} parent=1 // loop_header_branch
      %25 = sbr.rel (%p23) target = $region8
    $region5: #{tpu_custom_call.1} parent=1 // loop_body
      %s27 = ssub.s32 %s22, 1
      %s28 = ssub.s32 %s22, 2
      %s35 = sadd.s32 1, %s30
      %p36 = scmp.ge.s32.totalorder %s35, 1
      %s37 = scalar_select %p36, 0, %s35
      %s38 = sadd.s32 1, %s29
      %s39 = scalar_select %p36, %s38, %s29
      %p40 = scmp.ge.s32.totalorder %s39, 2
      %s41 = scalar_select %p40, 0, %s39
      %s42 = ssub.s32 %s29, %s41
      %s43 = ssub.s32 %s30, %s37
      %s44 = sor.u32 %s42, %s43
      %p45 = scmp.eq.s32.totalorder %s44, 0
      %s47 = sadd.s32 %s46, 1
      %s48 = scalar_select %p45, %s46, %s47
      %p51 = pneg %p45
      %p52 = scmp.eq.s32.totalorder %s22, 1
      %p53 = por %p51, %p52
      %p54 = scmp.ne.s32.totalorder %s46, %s49
      %p55 = scmp.eq.s32.totalorder %s22, 0
      %p56 = por %p54, %p55
      %p57 = scmp.ne.s32.totalorder %s46, %s49
      %p58 = scmp.eq.s32.totalorder %s27, 1
      %p59 = por %p57, %p58
      %p60 = scmp.ne.s32.totalorder %s49, %s50
      %p61 = scmp.eq.s32.totalorder %s27, 0
      %p62 = por %p60, %p61
      %p63 = scmp.ne.s32.totalorder %s49, %s50
      %p64 = scmp.eq.s32.totalorder %s28, 1
      %p65 = por %p63, %p64
      %p67 = scmp.ne.s32.totalorder %s50, %s66
      %p68 = scmp.eq.s32.totalorder %s28, 0
      %p69 = por %p67, %p68
      %s70 = sadd.s32 %s30, 1
      %s71 = sadd.s32 %s37, 1
      %s72 = ssub.s32 %s29, %s41
      %s73 = ssub.s32 %s70, %s71
      %s74 = sor.u32 %s72, %s73
      %p75 = scmp.eq.s32.totalorder %s74, 0
      %s77 = sadd.s32 %s76, 1
      %s78 = scalar_select %p75, %s76, %s77
      %p81 = pneg %p75
      %p82 = scmp.eq.s32.totalorder %s22, 1
      %p83 = por %p81, %p82
      %p84 = scmp.ne.s32.totalorder %s76, %s79
      %p85 = scmp.eq.s32.totalorder %s22, 0
      %p86 = por %p84, %p85
      %p87 = scmp.ne.s32.totalorder %s76, %s79
      %p88 = scmp.eq.s32.totalorder %s27, 1
      %p89 = por %p87, %p88
      %p90 = scmp.ne.s32.totalorder %s79, %s80
      %p91 = scmp.eq.s32.totalorder %s27, 0
      %p92 = por %p90, %p91
      %p93 = scmp.ne.s32.totalorder %s79, %s80
      %p94 = scmp.eq.s32.totalorder %s28, 1
      %p95 = por %p93, %p94
      %p97 = scmp.ne.s32.totalorder %s80, %s96
      %p98 = scmp.eq.s32.totalorder %s28, 0
      %p99 = por %p97, %p98
      %s101 = sadd.s32 %s100, 1
      %p104 = scmp.eq.s32.totalorder %s22, 1
      %p105 = scmp.ne.s32.totalorder %s100, %s102
      %p106 = scmp.eq.s32.totalorder %s22, 0
      %p107 = por %p105, %p106
      %p108 = scmp.ne.s32.totalorder %s100, %s102
      %p109 = scmp.eq.s32.totalorder %s27, 1
      %p110 = por %p108, %p109
      %p111 = scmp.ne.s32.totalorder %s102, %s103
      %p112 = scmp.eq.s32.totalorder %s27, 0
      %p113 = por %p111, %p112
      %p114 = scmp.ne.s32.totalorder %s102, %s103
      %p115 = scmp.eq.s32.totalorder %s28, 1
      %p116 = por %p114, %p115
      %p118 = scmp.ne.s32.totalorder %s103, %s117
      %p119 = scmp.eq.s32.totalorder %s28, 0
      %p120 = por %p118, %p119
      %s121 = ssub.s32 %s29, %s41
      %p122 = scmp.eq.s32.totalorder %s121, 0
      %s124 = sadd.s32 %s123, 1
      %s125 = scalar_select %p122, %s123, %s124
      %p128 = pneg %p122
      %p129 = scmp.eq.s32.totalorder %s22, 1
      %p130 = por %p128, %p129
      %p131 = scmp.ne.s32.totalorder %s123, %s126
      %p132 = scmp.eq.s32.totalorder %s22, 0
      %p133 = por %p131, %p132
      %p134 = scmp.ne.s32.totalorder %s123, %s126
      %p135 = scmp.eq.s32.totalorder %s27, 1
      %p136 = por %p134, %p135
      %p137 = scmp.ne.s32.totalorder %s126, %s127
      %p138 = scmp.eq.s32.totalorder %s27, 0
      %p139 = por %p137, %p138
      %p140 = scmp.ne.s32.totalorder %s126, %s127
      %p141 = scmp.eq.s32.totalorder %s28, 1
      %p142 = por %p140, %p141
      %p144 = scmp.ne.s32.totalorder %s127, %s143
      %p145 = scmp.eq.s32.totalorder %s28, 0
      %p146 = por %p144, %p145
      %s148 = sadd.s32 %s147, 1
      %p151 = scmp.eq.s32.totalorder %s22, 1
      %p152 = scmp.ne.s32.totalorder %s147, %s149
      %p153 = scmp.eq.s32.totalorder %s22, 0
      %p154 = por %p152, %p153
      %p155 = scmp.ne.s32.totalorder %s147, %s149
      %p156 = scmp.eq.s32.totalorder %s27, 1
      %p157 = por %p155, %p156
      %p158 = scmp.ne.s32.totalorder %s149, %s150
      %p159 = scmp.eq.s32.totalorder %s27, 0
      %p160 = por %p158, %p159
      %p161 = scmp.ne.s32.totalorder %s149, %s150
      %p162 = scmp.eq.s32.totalorder %s28, 1
      %p163 = por %p161, %p162
      %p165 = scmp.ne.s32.totalorder %s150, %s164
      %p166 = scmp.eq.s32.totalorder %s28, 0
      %p167 = por %p165, %p166
      %s169 = sadd.s32 %s168, 1
      %p172 = scmp.eq.s32.totalorder %s22, 1
      %p173 = scmp.ne.s32.totalorder %s168, %s170
      %p174 = scmp.eq.s32.totalorder %s22, 0
      %p175 = por %p173, %p174
      %p176 = scmp.ne.s32.totalorder %s168, %s170
      %p177 = scmp.eq.s32.totalorder %s27, 1
      %p178 = por %p176, %p177
      %p179 = scmp.ne.s32.totalorder %s170, %s171
      %p180 = scmp.eq.s32.totalorder %s27, 0
      %p181 = por %p179, %p180
      %p182 = scmp.ne.s32.totalorder %s170, %s171
      %p183 = scmp.eq.s32.totalorder %s28, 1
      %p184 = por %p182, %p183
      %p186 = scmp.ne.s32.totalorder %s171, %s185
      %p187 = scmp.eq.s32.totalorder %s28, 0
      %p188 = por %p186, %p187
      %s190 = sadd.s32 %s189, 1
      %p193 = scmp.eq.s32.totalorder %s22, 1
      %p194 = scmp.ne.s32.totalorder %s189, %s191
      %p195 = scmp.eq.s32.totalorder %s22, 0
      %p196 = por %p194, %p195
      %p197 = scmp.ne.s32.totalorder %s189, %s191
      %p198 = scmp.eq.s32.totalorder %s27, 1
      %p199 = por %p197, %p198
      %p200 = scmp.ne.s32.totalorder %s191, %s192
      %p201 = scmp.eq.s32.totalorder %s27, 0
      %p202 = por %p200, %p201
      %p203 = scmp.ne.s32.totalorder %s191, %s192
      %p204 = scmp.eq.s32.totalorder %s28, 1
      %p205 = por %p203, %p204
      %p207 = scmp.ne.s32.totalorder %s192, %s206
      %p208 = scmp.eq.s32.totalorder %s28, 0
      %p209 = por %p207, %p208
      %s210 = ssub.s32 %s29, %s41
      %s211 = ssub.s32 %s30, %s37
      %s212 = sor.u32 %s210, %s211
      %p213 = scmp.eq.s32.totalorder %s212, 0
      %s215 = sadd.s32 %s214, 1
      %s216 = scalar_select %p213, %s214, %s215
      %p219 = pneg %p213
      %p220 = scmp.eq.s32.totalorder %s22, 1
      %p221 = por %p219, %p220
      %p222 = scmp.ne.s32.totalorder %s214, %s217
      %p223 = scmp.eq.s32.totalorder %s22, 0
      %p224 = por %p222, %p223
      %p225 = scmp.ne.s32.totalorder %s214, %s217
      %p226 = scmp.eq.s32.totalorder %s27, 1
      %p227 = por %p225, %p226
      %p228 = scmp.ne.s32.totalorder %s217, %s218
      %p229 = scmp.eq.s32.totalorder %s27, 0
      %p230 = por %p228, %p229
      %p231 = scmp.ne.s32.totalorder %s217, %s218
      %p232 = scmp.eq.s32.totalorder %s28, 1
      %p233 = por %p231, %p232
      %p235 = scmp.ne.s32.totalorder %s218, %s234
      %p236 = scmp.eq.s32.totalorder %s28, 0
      %p237 = por %p235, %p236
      %s238 = ssub.s32 %s29, %s41
      %s239 = ssub.s32 %s30, %s37
      %s240 = sor.u32 %s238, %s239
      %p241 = scmp.eq.s32.totalorder %s240, 0
      %s243 = sadd.s32 %s242, 1
      %s244 = scalar_select %p241, %s242, %s243
      %p247 = pneg %p241
      %p248 = scmp.eq.s32.totalorder %s22, 1
      %p249 = por %p247, %p248
      %p250 = scmp.ne.s32.totalorder %s242, %s245
      %p251 = scmp.eq.s32.totalorder %s22, 0
      %p252 = por %p250, %p251
      %p253 = scmp.ne.s32.totalorder %s242, %s245
      %p254 = scmp.eq.s32.totalorder %s27, 1
      %p255 = por %p253, %p254
      %p256 = scmp.ne.s32.totalorder %s245, %s246
      %p257 = scmp.eq.s32.totalorder %s27, 0
      %p258 = por %p256, %p257
      %p259 = scmp.ne.s32.totalorder %s245, %s246
      %p260 = scmp.eq.s32.totalorder %s28, 1
      %p261 = por %p259, %p260
      %p263 = scmp.ne.s32.totalorder %s246, %s262
      %p264 = scmp.eq.s32.totalorder %s28, 0
      %p265 = por %p263, %p264
      %s266 = ssub.s32 %s29, %s41
      %s267 = ssub.s32 %s30, %s37
      %s268 = sor.u32 %s266, %s267
      %p269 = scmp.eq.s32.totalorder %s268, 0
      %s271 = sadd.s32 %s270, 1
      %s272 = scalar_select %p269, %s270, %s271
      %p275 = pneg %p269
      %p276 = scmp.eq.s32.totalorder %s22, 1
      %p277 = por %p275, %p276
      %p278 = scmp.ne.s32.totalorder %s270, %s273
      %p279 = scmp.eq.s32.totalorder %s22, 0
      %p280 = por %p278, %p279
      %p281 = scmp.ne.s32.totalorder %s270, %s273
      %p282 = scmp.eq.s32.totalorder %s27, 1
      %p283 = por %p281, %p282
      %p284 = scmp.ne.s32.totalorder %s273, %s274
      %p285 = scmp.eq.s32.totalorder %s27, 0
      %p286 = por %p284, %p285
      %p287 = scmp.ne.s32.totalorder %s273, %s274
      %p288 = scmp.eq.s32.totalorder %s28, 1
      %p289 = por %p287, %p288
      %p291 = scmp.ne.s32.totalorder %s274, %s290
      %p292 = scmp.eq.s32.totalorder %s28, 0
      %p293 = por %p291, %p292
      %p294 = scmp.le.s32.totalorder 1, %s22
      %p295 = scmp.lt.s32.totalorder %s22, 3
      %p296 = pnand %p294, %p295
      %p297 = pneg %p296
      // Predicated region
      $region9: #{tpu_custom_call.1} parent=5 // pred_check
        _
      $region10: #{tpu_custom_call.1} parent=5 // pred_check_branch
        %299 = sbr.rel (%p296) target = $region12
      $region11: #{tpu_custom_call.1} parent=5 // pred_region
        %s300 = ssub.s32 %s22, 1
        // Predicated region
        $region13: #{tpu_custom_call.1} parent=11 // pred_check
          %p301 = pneg %p113
        $region14: #{tpu_custom_call.1} parent=11 // pred_check_branch
          %303 = sbr.rel (%p301) target = $region16
        $region15: #{tpu_custom_call.1} parent=11 // pred_region
          _
        $region16: #{tpu_custom_call.1} parent=11 // pred_fallthru
          _
        // Predicated region
        $region17: #{tpu_custom_call.1} parent=11 // pred_check
          %p304 = pneg %p160
        $region18: #{tpu_custom_call.1} parent=11 // pred_check_branch
          %306 = sbr.rel (%p304) target = $region20
        $region19: #{tpu_custom_call.1} parent=11 // pred_region
          _
        $region20: #{tpu_custom_call.1} parent=11 // pred_fallthru
          _
        // Predicated region
        $region21: #{tpu_custom_call.1} parent=11 // pred_check
          %p307 = pneg %p181
        $region22: #{tpu_custom_call.1} parent=11 // pred_check_branch
          %309 = sbr.rel (%p307) target = $region24
        $region23: #{tpu_custom_call.1} parent=11 // pred_region
          _
        $region24: #{tpu_custom_call.1} parent=11 // pred_fallthru
          _
        // Predicated region
        $region25: #{tpu_custom_call.1} parent=11 // pred_check
          %p310 = pneg %p202
        $region26: #{tpu_custom_call.1} parent=11 // pred_check_branch
          %312 = sbr.rel (%p310) target = $region28
        $region27: #{tpu_custom_call.1} parent=11 // pred_region
          _
        $region28: #{tpu_custom_call.1} parent=11 // pred_fallthru
          _
      $region12: #{tpu_custom_call.1} parent=5 // pred_fallthru
        _
      %p313 = scmp.lt.s32.totalorder %s22, 2
      // Predicated region
      $region29: #{tpu_custom_call.1} parent=5 // pred_check
        %p314 = pneg %p313
      $region30: #{tpu_custom_call.1} parent=5 // pred_check_branch
        %316 = sbr.rel (%p314) target = $region32
      $region31: #{tpu_custom_call.1} parent=5 // pred_region
        // Predicated region
        $region33: #{tpu_custom_call.1} parent=31 // pred_check
          %p317 = pneg %p56
        $region34: #{tpu_custom_call.1} parent=31 // pred_check_branch
          %319 = sbr.rel (%p317) target = $region36
        $region35: #{tpu_custom_call.1} parent=31 // pred_region
          %p320 = scmp.lt.s32.totalorder %s29, 1
          %s321 = scalar_select %p320, %s29, 1
          %p322 = scmp.lt.s32.totalorder %s30, 1
          %s323 = scalar_select %p322, %s30, 1
          %s324 = smul.addr %s321, 2
          %s325 = sadd.s32 %s323, %s324
          %s326 = smul.addr %s325, 4
          %s327 = scalar_lea.vmem %s0, %s326
        $region36: #{tpu_custom_call.1} parent=31 // pred_fallthru
          _
        // Predicated region
        $region37: #{tpu_custom_call.1} parent=31 // pred_check
          %p328 = pneg %p86
        $region38: #{tpu_custom_call.1} parent=31 // pred_check_branch
          %330 = sbr.rel (%p328) target = $region40
        $region39: #{tpu_custom_call.1} parent=31 // pred_region
          %s331 = sadd.s32 %s30, 1
          %p332 = scmp.lt.s32.totalorder %s29, 1
          %s333 = scalar_select %p332, %s29, 1
          %p334 = scmp.lt.s32.totalorder %s331, 1
          %s335 = scalar_select %p334, %s331, 1
          %s336 = smul.addr %s333, 2
          %s337 = sadd.s32 %s335, %s336
          %s338 = smul.addr %s337, 4
          %s339 = scalar_lea.vmem %s1, %s338
          %s340 = sadd.s32 %s30, 1
        $region40: #{tpu_custom_call.1} parent=31 // pred_fallthru
          _
        // Predicated region
        $region41: #{tpu_custom_call.1} parent=31 // pred_check
          %p341 = pneg %p133
        $region42: #{tpu_custom_call.1} parent=31 // pred_check_branch
          %343 = sbr.rel (%p341) target = $region44
        $region43: #{tpu_custom_call.1} parent=31 // pred_region
          %p344 = scmp.lt.s32.totalorder %s29, 1
          %s345 = scalar_select %p344, %s29, 1
          %s346 = smul.addr %s345, 2
          %s347 = smul.addr %s346, 8
          %s348 = scalar_lea.vmem %s3, %s347
        $region44: #{tpu_custom_call.1} parent=31 // pred_fallthru
          _
        // Predicated region
        $region45: #{tpu_custom_call.1} parent=31 // pred_check
          %p349 = pneg %p224
        $region46: #{tpu_custom_call.1} parent=31 // pred_check_branch
          %351 = sbr.rel (%p349) target = $region48
        $region47: #{tpu_custom_call.1} parent=31 // pred_region
          %p352 = scmp.lt.s32.totalorder %s29, 1
          %s353 = scalar_select %p352, %s29, 1
          %p354 = scmp.lt.s32.totalorder %s30, 0
          %s355 = scalar_select %p354, %s30, 0
          %s356 = sadd.s32 %s355, %s353
          %s357 = smul.addr %s356, 2
          %s358 = scalar_lea.vmem %s7, %s357
        $region48: #{tpu_custom_call.1} parent=31 // pred_fallthru
          _
      $region32: #{tpu_custom_call.1} parent=5 // pred_fallthru
        _
      %p359 = scmp.le.s32.totalorder 1, %s22
      %p360 = scmp.lt.s32.totalorder %s22, 3
      %p361 = pnand %p359, %p360
      %p362 = pneg %p361
      // Predicated region
      $region49: #{tpu_custom_call.1} parent=5 // pred_check
        _
      $region50: #{tpu_custom_call.1} parent=5 // pred_check_branch
        %364 = sbr.rel (%p361) target = $region52
      $region51: #{tpu_custom_call.1} parent=5 // pred_region
        %s365 = ssub.s32 %s22, 1
        %p366 = scmp.lt.s32.totalorder %s31, 1
        %s367 = scalar_select %p366, %s31, 1
        %p368 = scmp.lt.s32.totalorder %s32, 1
        %s369 = scalar_select %p368, %s32, 1
        %s370 = smul.addr %s367, 2
        %s371 = sadd.s32 %s369, %s370
        %s372 = smul.addr %s371, 4
        %s373 = scalar_lea.vmem %s0, %s372
        %p374 = pneg %p62
        %p375 = pneg %p59
        %s376 = sadd.s32 %s32, 1
        %p377 = scmp.lt.s32.totalorder %s31, 1
        %s378 = scalar_select %p377, %s31, 1
        %p379 = scmp.lt.s32.totalorder %s376, 1
        %s380 = scalar_select %p379, %s376, 1
        %s381 = smul.addr %s378, 2
        %s382 = sadd.s32 %s380, %s381
        %s383 = smul.addr %s382, 4
        %s384 = scalar_lea.vmem %s1, %s383
        %p385 = pneg %p92
        %p386 = pneg %p89
        %p387 = pneg %p113
        %p388 = pneg %p110
        %p389 = scmp.lt.s32.totalorder %s31, 1
        %s390 = scalar_select %p389, %s31, 1
        %s391 = smul.addr %s390, 2
        %s392 = smul.addr %s391, 8
        %s393 = scalar_lea.vmem %s3, %s392
        %p394 = pneg %p139
        %p395 = pneg %p136
        %p396 = pneg %p160
        %p397 = pneg %p157
        %p398 = pneg %p181
        %p399 = pneg %p178
        %p400 = pneg %p202
        %p401 = pneg %p199
        %p402 = scmp.lt.s32.totalorder %s31, 1
        %s403 = scalar_select %p402, %s31, 1
        %p404 = scmp.lt.s32.totalorder %s32, 0
        %s405 = scalar_select %p404, %s32, 0
        %s406 = sadd.s32 %s405, %s403
        %s407 = smul.addr %s406, 2
        %s408 = scalar_lea.vmem %s7, %s407
        %p409 = pneg %p230
        %p410 = pneg %p227
        %p411 = pneg %p258
        %p412 = pneg %p255
        %s413 = sand.u32 %s245, 1
        %s414 = scalar_lea.sflag [#allocation3], %s413
        %s415 = sand.u32 %s245, 1
        %s416 = smul.addr %s415, 8
        %s417 = scalar_lea.vmem [#allocation2], %s416
        %p418 = pneg %p286
        %p419 = pneg %p283
        %s420 = sand.u32 %s273, 1
        %s421 = scalar_lea.sflag [#allocation5], %s420
        %s422 = sand.u32 %s273, 1
        %s423 = smul.addr %s422, 8
        %s424 = scalar_lea.vmem [#allocation4], %s423
        %p425 = scmp.lt.s32.totalorder %s31, 1
        %s426 = scalar_select %p425, %s31, 1
        %p427 = scmp.lt.s32.totalorder %s32, 1
        %s428 = scalar_select %p427, %s32, 1
        %s429 = smul.addr %s426, 2
        %s430 = sadd.s32 %s428, %s429
        %s431 = smul.addr %s430, 4
        %s432 = scalar_lea.vmem %s0, %s431
        %s433 = sadd.s32 %s32, 1
        %p434 = scmp.lt.s32.totalorder %s31, 1
        %s435 = scalar_select %p434, %s31, 1
        %p436 = scmp.lt.s32.totalorder %s433, 1
        %s437 = scalar_select %p436, %s433, 1
        %s438 = smul.addr %s435, 2
        %s439 = sadd.s32 %s437, %s438
        %s440 = smul.addr %s439, 4
        %s441 = scalar_lea.vmem %s1, %s440
        %s442 = sadd.s32 %s32, 1
        %p443 = scmp.lt.s32.totalorder %s31, 1
        %s444 = scalar_select %p443, %s31, 1
        %s445 = smul.addr %s444, 2
        %s446 = smul.addr %s445, 8
        %s447 = scalar_lea.vmem %s3, %s446
        %p448 = scmp.lt.s32.totalorder %s31, 1
        %s449 = scalar_select %p448, %s31, 1
        %p450 = scmp.lt.s32.totalorder %s32, 0
        %s451 = scalar_select %p450, %s32, 0
        %s452 = sadd.s32 %s451, %s449
        %s453 = smul.addr %s452, 2
        %s454 = scalar_lea.vmem %s7, %s453
        %v457 = vld [vmem:[%s432] sm:$0xf]
        %v458 = vld [vmem:[%s441] sm:$0xf]
        %v461 = vrot.slane %v457, 4
        %v462 = vrot.slane %v458, 4
        %463 = vrot.lane.b32.xlu0 %v461, 126
        %v464 = vpop.permute.xlu0 %463
        %465 = vrot.lane.b32.xlu0 %v462, 126
        %v466 = vpop.permute.xlu0 %465
        %vm467 = vcmask 1031168
        %v468 = vsel %vm467, %v464, %v466
        %vm469 = vcmask 1043456
        %v472 = vsel %vm469, %v457, %v468
        %v474 = vld [vmem:[%s2] sm:$0xf]
        %v475 = vld [vmem:[%s2 + $0x4] sm:$0xf]
        %v476 = vld [vmem:[%s447] sm:$0xff]
        %v477 = vld [vmem:[%s447 + $0x8] sm:$0xff]
        %479 = vset.pattern.permute.xlu0 0
        %480 = vperm.xlu0 %479, %v476
        %v481 = vpop.permute.xlu0 %480
        %484 = vset.pattern.permute.xlu0 0
        %485 = vperm.xlu0 %484, %v477
        %v486 = vpop.permute.xlu0 %485
        %v490 = vunpack.c.l.b16 %v474
        %v491 = vunpack.c.l.b16 %v475
        %v492 = vpack.c.b16 %v491, %v490
        %vm493 = vcmask 130048
        %v495 = vsel %vm493, %v492, 0
        %497 = vmatprep.subr.bf16.mxu0 0
        %498 = vmatpush1.bf16.msra.mxu0 %v472
        %499 = vmatprep.subr.bf16.mxu0 0
        %500 = vmatpush1.bf16.msra.mxu0 0
        %501 = vmatprep.subr.bf16.mxu0 0
        %502 = vmatpush1.bf16.msra.mxu0 0
        %503 = vmatprep.subr.bf16.mxu0 0
        %504 = vmatpush1.bf16.msra.mxu0 0
        %505 = vmatprep.subr.bf16.mxu0 0
        %506 = vmatpush1.bf16.msra.mxu0 0
        %507 = vmatprep.subr.bf16.mxu0 0
        %508 = vmatpush1.bf16.msra.mxu0 0
        %509 = vmatprep.subr.bf16.mxu0 0
        %510 = vmatpush1.bf16.msra.mxu0 0
        %511 = vmatprep.subr.bf16.mxu0 0
        %512 = vmatpush1.bf16.msra.mxu0 0
        %513 = vmatprep.subr.bf16.mxu0 0
        %514 = vmatpush1.bf16.msra.mxu0 0
        %515 = vmatprep.subr.bf16.mxu0 0
        %516 = vmatpush1.bf16.msra.mxu0 0
        %517 = vmatprep.subr.bf16.mxu0 0
        %518 = vmatpush1.bf16.msra.mxu0 0
        %519 = vmatprep.subr.bf16.mxu0 0
        %520 = vmatpush1.bf16.msra.mxu0 0
        %521 = vmatprep.subr.bf16.mxu0 0
        %522 = vmatpush1.bf16.msra.mxu0 0
        %523 = vmatprep.subr.bf16.mxu0 0
        %524 = vmatpush1.bf16.msra.mxu0 0
        %525 = vmatprep.subr.bf16.mxu0 0
        %526 = vmatpush1.bf16.msra.mxu0 0
        %527 = vmatprep.subr.bf16.mxu0 0
        %528 = vmatpush1.bf16.msra.mxu0 0
        %529 = vmatprep.mubr.bf16.mxu0 0
        %530 = vmatmul.mubr.bf16.gmra.mrb[0].mxu0 %v495
        %v531 = vpop.f32.mrb[0].mxu0
        %v532 = vadd.f32 %v481, %v531
        %v533 = vpop.f32.mrb[0].mxu0
        %v534 = vpop.f32.mrb[0].mxu0
        %v535 = vadd.f32 %v486, %v534
        %v536 = vpop.f32.mrb[0].mxu0
        %537 = vdwg.mxu0
        %v538 = vld [vmem:[%s6] sm:$0xf]
        %v539 = vld [vmem:[%s6 + $0x4] sm:$0xf]
        %v540 = vld [vmem:[%s454] sm:$0x3]
        %v543 = vunpack.c.l.b16 %v538
        %v544 = vunpack.c.l.b16 %v539
        %v545 = vpack.c.b16 %v544, %v543
        %vm546 = vcmask 31744
        %v548 = vsel %vm546, %v545, 0
        %vm550 = vcmask 1041408
        %v552 = vsel %vm550, %v540, 0
        %554 = vmatprep.subr.bf16.mxu0 0
        %555 = vmatpush1.bf16.msra.mxu0 %v552
        %556 = vmatprep.subr.bf16.mxu0 0
        %557 = vmatpush1.bf16.msra.mxu0 0
        %558 = vmatprep.subr.bf16.mxu0 0
        %559 = vmatpush1.bf16.msra.mxu0 0
        %560 = vmatprep.subr.bf16.mxu0 0
        %561 = vmatpush1.bf16.msra.mxu0 0
        %562 = vmatprep.subr.bf16.mxu0 0
        %563 = vmatpush1.bf16.msra.mxu0 0
        %564 = vmatprep.subr.bf16.mxu0 0
        %565 = vmatpush1.bf16.msra.mxu0 0
        %566 = vmatprep.subr.bf16.mxu0 0
        %567 = vmatpush1.bf16.msra.mxu0 0
        %568 = vmatprep.subr.bf16.mxu0 0
        %569 = vmatpush1.bf16.msra.mxu0 0
        %570 = vmatprep.subr.bf16.mxu0 0
        %571 = vmatpush1.bf16.msra.mxu0 0
        %572 = vmatprep.subr.bf16.mxu0 0
        %573 = vmatpush1.bf16.msra.mxu0 0
        %574 = vmatprep.subr.bf16.mxu0 0
        %575 = vmatpush1.bf16.msra.mxu0 0
        %576 = vmatprep.subr.bf16.mxu0 0
        %577 = vmatpush1.bf16.msra.mxu0 0
        %578 = vmatprep.subr.bf16.mxu0 0
        %579 = vmatpush1.bf16.msra.mxu0 0
        %580 = vmatprep.subr.bf16.mxu0 0
        %581 = vmatpush1.bf16.msra.mxu0 0
        %582 = vmatprep.subr.bf16.mxu0 0
        %583 = vmatpush1.bf16.msra.mxu0 0
        %584 = vmatprep.subr.bf16.mxu0 0
        %585 = vmatpush1.bf16.msra.mxu0 0
        %586 = vmatprep.mubr.bf16.mxu0 0
        %587 = vmatmul.mubr.bf16.gmra.mrb[0].mxu0 %v548
        %v588 = vpop.f32.mrb[0].mxu0
        %v589 = vadd.f32 0.0, %v588
        %v590 = vpop.f32.mrb[0].mxu0
        %v591 = vpop.f32.mrb[0].mxu0
        %v592 = vadd.f32 0.0, %v591
        %v593 = vpop.f32.mrb[0].mxu0
        %594 = vdwg.mxu0
        %v595 = vadd.f32 %v532, %v589
        %v596 = vadd.f32 %v535, %v592
        %v597 = vpack.c.bf16 %v595, %v595
        %v598 = vtanh.bf16.pop %v597
        %v599 = vpack.c.bf16 %v596, %v596
        %v600 = vxor.u32 %v599, 2147516416
        %v602 = vmul.bf16 %v600, 1069105081
        %v603 = vpow.bf16.pop %v602
        %v604 = vadd.bf16 %v603, 1065369472
        %v605 = vrcp.bf16.pop %v604
        %v606 = vmul.bf16 1065369472, %v605
        %v607 = vmul.bf16 %v598, %v606
        %v608 = vld [vmem:[%s4] sm:$0xf]
        %v609 = vld [vmem:[%s5] sm:$0xff]
        %611 = vset.pattern.permute.xlu0 0
        %612 = vperm.xlu0 %611, %v609
        %v613 = vpop.permute.xlu0 %612
        %vm615 = vcmask 64512
        %v617 = vsel %vm615, %v608, 0
        %v620 = vsel %vm469, %v607, 0
        %622 = vmatprep.subr.bf16.mxu0 0
        %623 = vmatpush1.bf16.msra.mxu0 %v620
        %624 = vmatprep.subr.bf16.mxu0 0
        %625 = vmatpush1.bf16.msra.mxu0 0
        %626 = vmatprep.subr.bf16.mxu0 0
        %627 = vmatpush1.bf16.msra.mxu0 0
        %628 = vmatprep.subr.bf16.mxu0 0
        %629 = vmatpush1.bf16.msra.mxu0 0
        %630 = vmatprep.subr.bf16.mxu0 0
        %631 = vmatpush1.bf16.msra.mxu0 0
        %632 = vmatprep.subr.bf16.mxu0 0
        %633 = vmatpush1.bf16.msra.mxu0 0
        %634 = vmatprep.subr.bf16.mxu0 0
        %635 = vmatpush1.bf16.msra.mxu0 0
        %636 = vmatprep.subr.bf16.mxu0 0
        %637 = vmatpush1.bf16.msra.mxu0 0
        %638 = vmatprep.subr.bf16.mxu0 0
        %639 = vmatpush1.bf16.msra.mxu0 0
        %640 = vmatprep.subr.bf16.mxu0 0
        %641 = vmatpush1.bf16.msra.mxu0 0
        %642 = vmatprep.subr.bf16.mxu0 0
        %643 = vmatpush1.bf16.msra.mxu0 0
        %644 = vmatprep.subr.bf16.mxu0 0
        %645 = vmatpush1.bf16.msra.mxu0 0
        %646 = vmatprep.subr.bf16.mxu0 0
        %647 = vmatpush1.bf16.msra.mxu0 0
        %648 = vmatprep.subr.bf16.mxu0 0
        %649 = vmatpush1.bf16.msra.mxu0 0
        %650 = vmatprep.subr.bf16.mxu0 0
        %651 = vmatpush1.bf16.msra.mxu0 0
        %652 = vmatprep.subr.bf16.mxu0 0
        %653 = vmatpush1.bf16.msra.mxu0 0
        %654 = vmatprep.mubr.bf16.mxu0 0
        %655 = vmatmul.mubr.bf16.gmra.mrb[0].mxu0 %v617
        %v656 = vpop.f32.mrb[0].mxu0
        %v657 = vadd.f32 %v613, %v656
        %v658 = vpop.f32.mrb[0].mxu0
        %v659 = vpop.f32.mrb[0].mxu0
        %v660 = vpop.f32.mrb[0].mxu0
        %661 = vdwg.mxu0
        %662 = vst [vmem:[%s424] sm:$0xff] %v657
        %v663 = vunpack.c.l.bf16 %v457
        %v664 = vunpack.c.l.bf16 %v458
        %666 = vrot.lane.b32.xlu0 %v657, 2
        %v667 = vpop.permute.xlu0 %666
        %v669 = vadd.f32 %v663, %v667
        %v670 = vadd.f32 %v664, %v667
        %673 = vrot.lane.b32.xlu0 %v669, 126
        %v674 = vpop.permute.xlu0 %673
        %675 = vrot.lane.b32.xlu0 %v670, 126
        %v676 = vpop.permute.xlu0 %675
        %vm677 = vcmask 1031168
        %v678 = vsel %vm677, %v674, %v676
        %680 = vst [vmem:[%s417] sm:$0xff] %v678
        %s681 = sand.u32 %s245, 1
        %s682 = scalar_lea.sflag [#allocation3], %s681
        %s683 = sand.u32 %s245, 1
        %s684 = smul.addr %s683, 8
        %s685 = scalar_lea.vmem [#allocation2], %s684
        %s686 = sand.u32 %s273, 1
        %s687 = scalar_lea.sflag [#allocation5], %s686
        %s688 = sand.u32 %s273, 1
        %s689 = smul.addr %s688, 8
        %s690 = scalar_lea.vmem [#allocation4], %s689
        // Predicated region
        $region53: #{tpu_custom_call.1} parent=51 // pred_check
          %p691 = pneg %p255
        $region54: #{tpu_custom_call.1} parent=51 // pred_check_branch
          %693 = sbr.rel (%p691) target = $region56
        $region55: #{tpu_custom_call.1} parent=51 // pred_region
          %s695 = ssub.s32 128, 128
          %696 = vsyncadd %s682, %s695
          %s697 = sadd.s32 %s32, %s31
          %s698 = smul.addr %s697, 128
          %s699 = scalar_lea.hbm %s8, %s698
          %s701 = sshll.u32 %s685, 4
          %s702 = int_to_ptr.vmem [resolvable:$true] %s701
          %704 = dma.vmem_to_hbm [thread:$0]  %s702, 128, %s699, %s682
        $region56: #{tpu_custom_call.1} parent=51 // pred_fallthru
          _
        // Predicated region
        $region57: #{tpu_custom_call.1} parent=51 // pred_check
          %p705 = pneg %p283
        $region58: #{tpu_custom_call.1} parent=51 // pred_check_branch
          %707 = sbr.rel (%p705) target = $region60
        $region59: #{tpu_custom_call.1} parent=51 // pred_region
          %s709 = ssub.s32 128, 128
          %710 = vsyncadd %s687, %s709
          %s711 = sadd.s32 %s32, %s31
          %s712 = smul.addr %s711, 128
          %s713 = scalar_lea.hbm %s9, %s712
          %s715 = sshll.u32 %s690, 4
          %s716 = int_to_ptr.vmem [resolvable:$true] %s715
          %718 = dma.vmem_to_hbm [thread:$0]  %s716, 128, %s713, %s687
        $region60: #{tpu_custom_call.1} parent=51 // pred_fallthru
          _
      $region52: #{tpu_custom_call.1} parent=5 // pred_fallthru
        _
      %p719 = scmp.le.s32.totalorder 2, %s22
      // Predicated region
      $region61: #{tpu_custom_call.1} parent=5 // pred_check
        %p720 = pneg %p719
      $region62: #{tpu_custom_call.1} parent=5 // pred_check_branch
        %722 = sbr.rel (%p720) target = $region64
      $region63: #{tpu_custom_call.1} parent=5 // pred_region
        %s723 = ssub.s32 %s22, 2
        // Predicated region
        $region65: #{tpu_custom_call.1} parent=63 // pred_check
          %p724 = pneg %p261
        $region66: #{tpu_custom_call.1} parent=63 // pred_check_branch
          %726 = sbr.rel (%p724) target = $region68
        $region67: #{tpu_custom_call.1} parent=63 // pred_region
          %s727 = sand.u32 %s246, 1
          %s728 = scalar_lea.sflag [#allocation3], %s727
          %s729 = sand.u32 %s246, 1
          %s730 = smul.addr %s729, 8
          %s731 = scalar_lea.vmem [#allocation2], %s730
          %732 = dma.done %s728, 128
        $region68: #{tpu_custom_call.1} parent=63 // pred_fallthru
          _
        // Predicated region
        $region69: #{tpu_custom_call.1} parent=63 // pred_check
          %p733 = pneg %p289
        $region70: #{tpu_custom_call.1} parent=63 // pred_check_branch
          %735 = sbr.rel (%p733) target = $region72
        $region71: #{tpu_custom_call.1} parent=63 // pred_region
          %s736 = sand.u32 %s274, 1
          %s737 = scalar_lea.sflag [#allocation5], %s736
          %s738 = sand.u32 %s274, 1
          %s739 = smul.addr %s738, 8
          %s740 = scalar_lea.vmem [#allocation4], %s739
          %741 = dma.done %s737, 128
        $region72: #{tpu_custom_call.1} parent=63 // pred_fallthru
          _
      $region64: #{tpu_custom_call.1} parent=5 // pred_fallthru
        _
    $region6: #{tpu_custom_call.1} parent=1 // loop_footer
      %s26 = sadd.s32 1, %s22
    $region7: #{tpu_custom_call.1} parent=1 // loop_footer_branch
      %21 = sbr.rel target = $region3
    $region8: #{tpu_custom_call.1} parent=1 // loop_exit
      _
    %742 = vsyncpa [#allocation3], 1
    %s743 = scalar_lea.sflag [#allocation3], 1
    %744 = vsyncpa %s743, 1
    %745 = vsyncpa [#allocation5], 1
    %s746 = scalar_lea.sflag [#allocation5], 1
    %747 = vsyncpa %s746, 1

</llo_original>
